<compile_context>
chip_gen: v7x
topology: tpu7x:2x2x1
jax: 0.10.0
libtpu: 0.0.40
codegen_flags: <defaults>
</compile_context>

<pallas_src>
import functools

import jax
import jax.numpy as jnp
from jax.experimental import pallas as pl
from jax.experimental.pallas import tpu as pltpu


def _round_up(x: int, m: int) -> int:
    return ((x + m - 1) // m) * m


def _pow(k, order):
    """torch.pow(k, order) with static `order` (integer_pow when integral)."""
    o = float(order)
    if o == 1.0:
        return k
    if o.is_integer():
        return jax.lax.integer_pow(k, int(o))
    return jnp.power(k, jnp.float32(o))


_CONTRACT_DIM0 = (((0,), (0,)), ((), ()))   # contract axis 0 of both operands


def _poly_tile_kernel_plain(lhs_ref, rhs_ref, out_ref, *, order):
    """One (TM, TN) tile of PolyKernel.forward(xs), normal=False.

    lhs_ref : VMEM (D, TM) f32 -- xs column-tile (users i)
    rhs_ref : VMEM (D, TN) f32 -- xs column-tile (users j)
    out_ref : VMEM (TM, TN)    -- covariance tile
    """
    k = jax.lax.dot_general(lhs_ref[...], rhs_ref[...], _CONTRACT_DIM0,
                            preferred_element_type=jnp.float32)
    out_ref[...] = _pow(k, order).astype(out_ref.dtype)


def _poly_tile_kernel_normal(sigma_sq_ref, lhs_ref, rhs_ref, inv_l_ref,
                             inv_r_ref, out_ref, *, order):
    """One (TM, TN) tile of PolyKernel.forward(xs), normal=True.

    sigma_sq_ref : SMEM (1,)     f32 -- sigma_f ** 2 (pre-squared once)
    lhs_ref      : VMEM (D, TM)  f32 -- xs column-tile (users i)
    rhs_ref      : VMEM (D, TN)  f32 -- xs column-tile (users j)
    inv_l_ref    : VMEM (1, TM)  f32 -- 1/||x_i|| (precomputed in wrapper)
    inv_r_ref    : VMEM (1, TN)  f32 -- 1/||x_j||
    out_ref      : VMEM (TM, TN)     -- covariance tile
    """
    lhs = lhs_ref[...] * inv_l_ref[...]          # fold 1/||x|| into operands
    rhs = rhs_ref[...] * inv_r_ref[...]
    k = jax.lax.dot_general(lhs, rhs, _CONTRACT_DIM0,
                            preferred_element_type=jnp.float32)
    out = _pow(k, order) * sigma_sq_ref[0]       # single fused VPU mul
    out_ref[...] = out.astype(out_ref.dtype)


def poly_kernel_covariance(xs, sigma_f, *, order=1, normal=False,
                           out_dtype=jnp.float32):
    """Pallas call wrapping PolyKernel.forward on xs of shape (D, N)."""
    xs = jnp.asarray(xs, jnp.float32)
    d, n = xs.shape
    if n == 0:
        return jnp.zeros((0, 0), out_dtype)

    # ---- tile policy (writeback-bound: big lane-dense output tiles) -------
    if n <= 1024:
        # Small-N fast path: one tile, (1,1) grid, no pipelining overhead.
        n_pad = _round_up(n, 128)
        tm = tn = n_pad
    else:
        # Pad N up to the tile size so tiles never collapse below 512.
        n_pad = _round_up(n, 512)
        tm = 512
        tn = 1024 if n_pad % 1024 == 0 else 512
    grid = (n_pad // tm, n_pad // tn)

    if n_pad != n:
        xs_p = jnp.zeros((d, n_pad), jnp.float32).at[:, :n].set(xs)
    else:
        xs_p = xs

    cost = pl.CostEstimate(
        flops=2 * n_pad * n_pad * d + 2 * n_pad * n_pad,
        transcendentals=0,
        bytes_accessed=4 * n_pad * n_pad + 8 * d * n_pad,
    )
    cparams = pltpu.CompilerParams(
        dimension_semantics=("parallel", "parallel"))

    # TODO(synk): Gram-matrix symmetry (compute only j>=i tiles, write both
    # halves from one compute) only saves MXU/VPU work which is already hidden
    # under the HBM writeback at D~16; skipped on purpose.
    # TODO(synk): out_dtype=bf16 would halve the dominant HBM store traffic,
    # but the covariance feeds inverse/Cholesky downstream, so f32 by default.

    if normal:
        # Per-column inverse norms, computed once (not per tile).  Padded
        # columns get 0 (no NaN leakage); valid all-zero columns get inf,
        # matching the reference's divide-by-zero NaN semantics.
        inv = jax.lax.rsqrt(jnp.sum(xs * xs, axis=0))            # (n,)
        inv_p = jnp.zeros((1, n_pad), jnp.float32).at[0, :n].set(inv)
        sigma_sq = (jnp.asarray(sigma_f, jnp.float32).reshape(-1)[:1]) ** 2

        kernel = functools.partial(_poly_tile_kernel_normal, order=order)
        out = pl.pallas_call(
            kernel,
            out_shape=jax.ShapeDtypeStruct((n_pad, n_pad), out_dtype),
            grid=grid,
            in_specs=[
                pl.BlockSpec(memory_space=pltpu.SMEM),            # sigma_f**2
                pl.BlockSpec((d, tm), lambda i, j: (0, i)),       # xs col tile i
                pl.BlockSpec((d, tn), lambda i, j: (0, j)),       # xs col tile j
                pl.BlockSpec((1, tm), lambda i, j: (0, i)),       # 1/||x_i||
                pl.BlockSpec((1, tn), lambda i, j: (0, j)),       # 1/||x_j||
            ],
            out_specs=pl.BlockSpec((tm, tn), lambda i, j: (i, j)),
            compiler_params=cparams,
            cost_estimate=cost,
        )(sigma_sq, xs_p, xs_p, inv_p, inv_p)
    else:
        kernel = functools.partial(_poly_tile_kernel_plain, order=order)
        out = pl.pallas_call(
            kernel,
            out_shape=jax.ShapeDtypeStruct((n_pad, n_pad), out_dtype),
            grid=grid,
            in_specs=[
                pl.BlockSpec((d, tm), lambda i, j: (0, i)),
                pl.BlockSpec((d, tn), lambda i, j: (0, j)),
            ],
            out_specs=pl.BlockSpec((tm, tn), lambda i, j: (i, j)),
            compiler_params=cparams,
            cost_estimate=cost,
        )(xs_p, xs_p)

    return out[:n, :n]


def kernel_gpr_covariance(pmatrix, sigma_f, idx=None, *, order=1,
                          normal=False):
    """Equivalent of Kernel_GPR.Covariance(idx).

    pmatrix: (dimension, num_users) f32 -- Projection.PMatrix
    idx:     optional 1-D int array of user indices (the gather is plain-JAX
             glue; could be fused via PrefetchScalarGridSpec for huge idx sets)
    """
    xs = pmatrix if idx is None else pmatrix[:, idx]     # IndexProjection.forward
    return poly_kernel_covariance(xs, sigma_f, order=order, normal=normal)


def _reference_covariance(pmatrix, sigma_f, idx=None, *, order=1,
                          normal=False):
    """Plain-JAX reference mirroring the PyTorch PolyKernel semantics."""
    xs = pmatrix if idx is None else pmatrix[:, idx]
    k = xs.T @ xs
    if normal:
        a = jnp.sum(xs ** 2, axis=0, keepdims=True) * jnp.ones(
            (xs.shape[1], xs.shape[1]))
        norm = jnp.sqrt(a) * jnp.sqrt(a.T)
        k = k / norm
        return jnp.power(k, order) * jnp.asarray(sigma_f).reshape(-1)[0] ** 2
    return jnp.power(k, order)


if __name__ == "__main__":
    # Deterministic parameter init matching Kernel_GPR.__init__:
    #   PMatrix = randn(dimension, num_users) / sqrt(dimension)
    #   Kernel.sigma_f = 1.0 ; noise = 0.01 (noise not used in Covariance())
    key = jax.random.PRNGKey(0)
    k1, k2, k3 = jax.random.split(key, 3)

    num_users = 64
    dimension = 16
    pmatrix = (jax.random.normal(k1, (dimension, num_users), dtype=jnp.float32)
               / jnp.sqrt(jnp.float32(dimension)))
    sigma_f = jnp.array([1.0], dtype=jnp.float32)

    # 1) Full covariance (idx=None), normalized polynomial kernel of order 2:
    #    matmul + hoisted inverse-norm scaling + pow + sigma^2 (small-N path).
    cov = kernel_gpr_covariance(pmatrix, sigma_f, idx=None, order=2,
                                normal=True)
    cov = jax.block_until_ready(cov)
    ref = _reference_covariance(pmatrix, sigma_f, idx=None, order=2,
                                normal=True)
    assert cov.shape == (num_users, num_users)
    assert jnp.allclose(cov, ref, atol=1e-5, rtol=1e-5)

    # 2) Default PolyKernel config (order=1, normal=False) on a gathered
    #    subset of users, as Covariance(idx) does.
    sub_idx = jnp.arange(0, num_users, 2, dtype=jnp.int32)     # 32 users
    cov_sub = kernel_gpr_covariance(pmatrix, sigma_f, idx=sub_idx,
                                    order=1, normal=False)
    cov_sub = jax.block_until_ready(cov_sub)
    ref_sub = _reference_covariance(pmatrix, sigma_f, idx=sub_idx,
                                    order=1, normal=False)
    assert jnp.allclose(cov_sub, ref_sub, atol=1e-5, rtol=1e-5)

    # 3) Non-lane-aligned N (pads 300 -> 384, still single-tile fast path);
    #    checks zero-padded columns do not leak NaN into valid entries.
    num_users_mid = 300
    pmatrix_mid = (jax.random.normal(k2, (dimension, num_users_mid),
                                     dtype=jnp.float32)
                   / jnp.sqrt(jnp.float32(dimension)))
    cov_mid = kernel_gpr_covariance(pmatrix_mid, sigma_f, idx=None,
                                    order=2, normal=True)
    cov_mid = jax.block_until_ready(cov_mid)
    ref_mid = _reference_covariance(pmatrix_mid, sigma_f, idx=None,
                                    order=2, normal=True)
    assert cov_mid.shape == (num_users_mid, num_users_mid)
    assert jnp.allclose(cov_mid, ref_mid, atol=1e-5, rtol=1e-5)

    # 4) N > 1024 exercises the multi-tile 512-tile grid path (pads 1100 ->
    #    1536, grid (3,3), both axes parallel) with the normalized kernel.
    num_users_big = 1100
    pmatrix_big = (jax.random.normal(k3, (dimension, num_users_big),
                                     dtype=jnp.float32)
                   / jnp.sqrt(jnp.float32(dimension)))
    cov_big = kernel_gpr_covariance(pmatrix_big, sigma_f, idx=None,
                                    order=2, normal=True)
    cov_big = jax.block_until_ready(cov_big)
    ref_big = _reference_covariance(pmatrix_big, sigma_f, idx=None,
                                    order=2, normal=True)
    assert cov_big.shape == (num_users_big, num_users_big)
    assert jnp.allclose(cov_big, ref_big, atol=1e-5, rtol=1e-5)

    # TODO(synk): GPR.get_posteriori / predict_loss / get_logmarginallikelihood
    # use torch.inverse and MultivariateNormal.log_prob (dense inverse +
    # Cholesky); no clean Pallas equivalent, left to jnp.linalg outside the
    # kernel.
    print("KERNEL_OK")
</pallas_src>

<mosaic_0001>
module attributes {stable_mosaic.version = 11 : i64} {
  func.func @_poly_tile_kernel_normal(%arg0: i32, %arg1: i32, %arg2: memref<1xf32, #tpu.memory_space<smem>>, %arg3: memref<16x128xf32, #tpu.memory_space<vmem>>, %arg4: memref<16x128xf32, #tpu.memory_space<vmem>>, %arg5: memref<1x128xf32, #tpu.memory_space<vmem>>, %arg6: memref<1x128xf32, #tpu.memory_space<vmem>>, %arg7: memref<128x128xf32, #tpu.memory_space<vmem>>) attributes {dimension_semantics = [#tpu.dimension_semantics<parallel>, #tpu.dimension_semantics<parallel>], iteration_bounds = array<i64: 1, 1>, scalar_prefetch = 0 : i64, scratch_operands = 0 : i64, tpu.core_type = #tpu.core_type<tc>, window_params = [{transform_indices = @transform_0, window_bounds = array<i64: 1>}, {transform_indices = @transform_1, window_bounds = array<i64: 16, 128>}, {transform_indices = @transform_2, window_bounds = array<i64: 16, 128>}, {transform_indices = @transform_3, window_bounds = array<i64: 1, 128>}, {transform_indices = @transform_4, window_bounds = array<i64: 1, 128>}, {transform_indices = @transform_5, window_bounds = array<i64: 128, 128>}]} {
    %c0 = arith.constant 0 : index
    %c0_0 = arith.constant 0 : index
    %0 = vector.load %arg3[%c0, %c0_0] : memref<16x128xf32, #tpu.memory_space<vmem>>, vector<16x128xf32>
    %c0_1 = arith.constant 0 : index
    %c0_2 = arith.constant 0 : index
    %1 = vector.load %arg5[%c0_1, %c0_2] : memref<1x128xf32, #tpu.memory_space<vmem>>, vector<1x128xf32>
    %2 = vector.broadcast %1 : vector<1x128xf32> to vector<16x128xf32>
    %3 = arith.mulf %0, %2 : vector<16x128xf32>
    %c0_3 = arith.constant 0 : index
    %c0_4 = arith.constant 0 : index
    %4 = vector.load %arg4[%c0_3, %c0_4] : memref<16x128xf32, #tpu.memory_space<vmem>>, vector<16x128xf32>
    %c0_5 = arith.constant 0 : index
    %c0_6 = arith.constant 0 : index
    %5 = vector.load %arg6[%c0_5, %c0_6] : memref<1x128xf32, #tpu.memory_space<vmem>>, vector<1x128xf32>
    %6 = vector.broadcast %5 : vector<1x128xf32> to vector<16x128xf32>
    %7 = arith.mulf %4, %6 : vector<16x128xf32>
    %cst = arith.constant dense<0.000000e+00> : vector<128x128xf32>
    %8 = tpu.matmul %3, %7, %cst {dimension_numbers = #tpu.dot_dimension_numbers<[0], [0], [1], [1], [0, 1, 1, 1], [], []>} : vector<16x128xf32>, vector<16x128xf32>, vector<128x128xf32> -> vector<128x128xf32>
    %9 = arith.mulf %8, %8 : vector<128x128xf32>
    %c0_7 = arith.constant 0 : index
    %10 = memref.load %arg2[%c0_7] : memref<1xf32, #tpu.memory_space<smem>>
    %11 = vector.broadcast %10 : f32 to vector<128x128xf32>
    %12 = arith.mulf %9, %11 : vector<128x128xf32>
    %c0_8 = arith.constant 0 : index
    %c0_9 = arith.constant 0 : index
    %13 = vector.load %arg7[%c0_8, %c0_9] : memref<128x128xf32, #tpu.memory_space<vmem>>, vector<128x128xf32>
    tpu.vector_store %arg7[%c0_8, %c0_9], %12 {strides = array<i32>} : memref<128x128xf32, #tpu.memory_space<vmem>>, vector<128x128xf32>,
    return
  }
  func.func @transform_0(%arg0: i32, %arg1: i32) -> i32 {
    %c0_i32 = arith.constant 0 : i32
    %c0_i32_0 = arith.constant 0 : i32
    return %c0_i32 : i32
  }
  func.func @transform_1(%arg0: i32, %arg1: i32) -> (i32, i32) {
    %c0_i32 = arith.constant 0 : i32
    %c0_i32_0 = arith.constant 0 : i32
    return %c0_i32, %arg0 : i32, i32
  }
  func.func @transform_2(%arg0: i32, %arg1: i32) -> (i32, i32) {
    %c0_i32 = arith.constant 0 : i32
    %c0_i32_0 = arith.constant 0 : i32
    return %c0_i32, %arg1 : i32, i32
  }
  func.func @transform_3(%arg0: i32, %arg1: i32) -> (i32, i32) {
    %c0_i32 = arith.constant 0 : i32
    %c0_i32_0 = arith.constant 0 : i32
    return %c0_i32, %arg0 : i32, i32
  }
  func.func @transform_4(%arg0: i32, %arg1: i32) -> (i32, i32) {
    %c0_i32 = arith.constant 0 : i32
    %c0_i32_0 = arith.constant 0 : i32
    return %c0_i32, %arg1 : i32, i32
  }
  func.func @transform_5(%arg0: i32, %arg1: i32) -> (i32, i32) {
    %c0_i32 = arith.constant 0 : i32
    return %arg0, %arg1 : i32, i32
  }
}

</mosaic_0001>

<llo_original>
// kernel: tpu_custom_call.1
$region0: #{tpu_custom_call.1}
  #allocation0 [shape = 'u32[]', space=smem, size = 0x4, offset = 0x4, fixed_abs, tag = 'smem constant byte address 0x4 - core index']
  #allocation1 [shape = 'u32[144,128]{1,0:T(1,128)}', space=vmem, size = 0x12000, scoped, tag = 'internal scratch']
  #allocation2 [shape = 'f32[1]{0:T(128)S(6)}', space=smem, size = 0x200, scoped, tag = 'scoped memory for tpu_custom_call.1']
  %s0 = inlined_call_operand.<no memory space> [shape: f32[1], index: 0, kind: input, shape index: {}]
  %s1 = inlined_call_operand.hbm [shape: f32[16,128], index: 1, kind: input, shape index: {}]
  %s2 = inlined_call_operand.hbm [shape: f32[16,128], index: 2, kind: input, shape index: {}]
  %s3 = inlined_call_operand.vmem [shape: f32[1,128], index: 3, kind: input, shape index: {}]
  %s4 = inlined_call_operand.vmem [shape: f32[1,128], index: 4, kind: input, shape index: {}]
  %s5 = inlined_call_operand.hbm [shape: f32[128,128], index: 5, kind: output, shape index: {}]
  %s6 = sld [smem:[#allocation0]]
  $region38: #{tpu_custom_call.1} parent=0
    _
  %s8 = ssub.s32 1, %s6
  %s9 = scalar_select 0, %s8, %s6
  %10 = sst [smem:[#allocation2]] %s0
  $region1: #{tpu_custom_call.1} parent=0
    #allocation3 [shape = 'u8[8192]{0}', space=vmem, size = 0x2000, scoped, tag = 'input window, operand 1, single buffered']
    #allocation4 [shape = 's32[1]{0}', space=sflag, size = 0x4, scoped, tag = 'scoped memory for tpu_custom_call.1']
    #allocation5 [shape = 's32[1]{0}', space=sflag, size = 0x4, scoped, tag = 'scoped memory for tpu_custom_call.1']
    #allocation6 [shape = 'u8[8192]{0}', space=vmem, size = 0x2000, scoped, tag = 'input window, operand 2, single buffered']
    #allocation7 [shape = 's32[1]{0}', space=sflag, size = 0x4, scoped, tag = 'scoped memory for tpu_custom_call.1']
    #allocation8 [shape = 'u8[65536]{0}', space=vmem, size = 0x10000, scoped, tag = 'output window, operand 0, single buffered']
    %11 = vsyncpa [#allocation4], 0
    %12 = vsyncpa [#allocation7], 0
    %13 = vsyncpa [#allocation5], 0
    // Predicated region
    $region2: #{tpu_custom_call.1} parent=1 // pred_check
      _
    $region3: #{tpu_custom_call.1} parent=1 // pred_check_branch
      %15 = sbr.rel (0) target = $region5
    $region4: #{tpu_custom_call.1} parent=1 // pred_region
      _
    $region5: #{tpu_custom_call.1} parent=1 // pred_fallthru
      _
    // Predicated region
    $region6: #{tpu_custom_call.1} parent=1 // pred_check
      _
    $region7: #{tpu_custom_call.1} parent=1 // pred_check_branch
      %17 = sbr.rel (0) target = $region9
    $region8: #{tpu_custom_call.1} parent=1 // pred_region
      %s19 = ssub.s32 256, 256
      %20 = vsyncadd [#allocation4], %s19
      %s21 = sshll.u32 [#allocation3], 4
      %s22 = int_to_ptr.vmem [resolvable:$true] %s21
      %27 = dma.hbm_to_vmem [thread:$0]  %s1, 256, %s22, [#allocation4], 128, 128, 8
    $region9: #{tpu_custom_call.1} parent=1 // pred_fallthru
      _
    // Predicated region
    $region10: #{tpu_custom_call.1} parent=1 // pred_check
      _
    $region11: #{tpu_custom_call.1} parent=1 // pred_check_branch
      %29 = sbr.rel (0) target = $region13
    $region12: #{tpu_custom_call.1} parent=1 // pred_region
      %s31 = ssub.s32 256, 256
      %32 = vsyncadd [#allocation7], %s31
      %s33 = sshll.u32 [#allocation6], 4
      %s34 = int_to_ptr.vmem [resolvable:$true] %s33
      %39 = dma.hbm_to_vmem [thread:$0]  %s2, 256, %s34, [#allocation7], 128, 128, 8
    $region13: #{tpu_custom_call.1} parent=1 // pred_fallthru
      _
    // Predicated region
    $region14: #{tpu_custom_call.1} parent=1 // pred_check
      _
    $region15: #{tpu_custom_call.1} parent=1 // pred_check_branch
      %41 = sbr.rel (0) target = $region17
    $region16: #{tpu_custom_call.1} parent=1 // pred_region
      _
    $region17: #{tpu_custom_call.1} parent=1 // pred_fallthru
      _
    // Predicated region
    $region18: #{tpu_custom_call.1} parent=1 // pred_check
      _
    $region19: #{tpu_custom_call.1} parent=1 // pred_check_branch
      %43 = sbr.rel (0) target = $region21
    $region20: #{tpu_custom_call.1} parent=1 // pred_region
      _
    $region21: #{tpu_custom_call.1} parent=1 // pred_fallthru
      _
    // Predicated region
    $region22: #{tpu_custom_call.1} parent=1 // pred_check
      _
    $region23: #{tpu_custom_call.1} parent=1 // pred_check_branch
      %45 = sbr.rel (0) target = $region25
    $region24: #{tpu_custom_call.1} parent=1 // pred_region
      %46 = dma.done [#allocation4], 256
    $region25: #{tpu_custom_call.1} parent=1 // pred_fallthru
      _
    // Predicated region
    $region26: #{tpu_custom_call.1} parent=1 // pred_check
      _
    $region27: #{tpu_custom_call.1} parent=1 // pred_check_branch
      %48 = sbr.rel (0) target = $region29
    $region28: #{tpu_custom_call.1} parent=1 // pred_region
      %49 = dma.done [#allocation7], 256
    $region29: #{tpu_custom_call.1} parent=1 // pred_fallthru
      _
    %v50 = vld [vmem:[#allocation3] sm:$0xff]
    %v51 = vld [vmem:[#allocation3 + $0x8] sm:$0xff]
    %v52 = vld [vmem:[%s3] sm:$0x1]
    %v54 = vlaneseq
    %v55 = vshrl.u32 %v54, 7
    %v56 = vsub.s32 0, %v55
    %v57 = vrot.slane %v52, %v56
    %v59 = vmul.f32 %v50, %v57
    %v60 = vmul.f32 %v51, %v57
    %v61 = vld [vmem:[#allocation6] sm:$0xff]
    %v62 = vld [vmem:[#allocation6 + $0x8] sm:$0xff]
    %v63 = vld [vmem:[%s4] sm:$0x1]
    %v65 = vlaneseq
    %v66 = vshrl.u32 %v65, 7
    %v67 = vsub.s32 0, %v66
    %v68 = vrot.slane %v63, %v67
    %v70 = vmul.f32 %v61, %v68
    %v71 = vmul.f32 %v62, %v68
    %72 = vxpose.xlu0.b32.start [1/16] %v59, 128
    %73 = vxpose.xlu0.b32.cont [2/16] %v60, 128
    %74 = vxpose.xlu0.b32.cont [3/16] 0.0, 128
    %75 = vxpose.xlu0.b32.cont [4/16] 0.0, 128
    %76 = vxpose.xlu0.b32.cont [5/16] 0.0, 128
    %77 = vxpose.xlu0.b32.cont [6/16] 0.0, 128
    %78 = vxpose.xlu0.b32.cont [7/16] 0.0, 128
    %79 = vxpose.xlu0.b32.cont [8/16] 0.0, 128
    %80 = vxpose.xlu0.b32.cont [9/16] 0.0, 128
    %81 = vxpose.xlu0.b32.cont [10/16] 0.0, 128
    %82 = vxpose.xlu0.b32.cont [11/16] 0.0, 128
    %83 = vxpose.xlu0.b32.cont [12/16] 0.0, 128
    %84 = vxpose.xlu0.b32.cont [13/16] 0.0, 128
    %85 = vxpose.xlu0.b32.cont [14/16] 0.0, 128
    %86 = vxpose.xlu0.b32.cont [15/16] 0.0, 128
    %87 = vxpose.xlu0.b32.end [16/16] 0.0, 128
    %v88 = vpop.trf.xlu0
    %v89 = vpop.trf.xlu0
    %v90 = vpop.trf.xlu0
    %v91 = vpop.trf.xlu0
    %v92 = vpop.trf.xlu0
    %v93 = vpop.trf.xlu0
    %v94 = vpop.trf.xlu0
    %v95 = vpop.trf.xlu0
    %v96 = vpop.trf.xlu0
    %v97 = vpop.trf.xlu0
    %v98 = vpop.trf.xlu0
    %v99 = vpop.trf.xlu0
    %v100 = vpop.trf.xlu0
    %v101 = vpop.trf.xlu0
    %v102 = vpop.trf.xlu0
    %v103 = vpop.trf.xlu0
    %vm104 = vcmask 130048
    %v106 = vsel %vm104, %v88, 0
    %v109 = vsel %vm104, %v89, 0
    %v112 = vsel %vm104, %v90, 0
    %v115 = vsel %vm104, %v91, 0
    %v118 = vsel %vm104, %v92, 0
    %v121 = vsel %vm104, %v93, 0
    %v124 = vsel %vm104, %v94, 0
    %v127 = vsel %vm104, %v95, 0
    %v130 = vsel %vm104, %v96, 0
    %v133 = vsel %vm104, %v97, 0
    %v136 = vsel %vm104, %v98, 0
    %v139 = vsel %vm104, %v99, 0
    %v142 = vsel %vm104, %v100, 0
    %v145 = vsel %vm104, %v101, 0
    %v148 = vsel %vm104, %v102, 0
    %v151 = vsel %vm104, %v103, 0
    %153 = vmatprep.subr.mxu0 0.0
    %154 = vmatpush1.msra.mxu0 %v70
    %155 = vmatprep.subr.mxu0 0.0
    %156 = vmatpush1.msra.mxu0 %v71
    %157 = vmatprep.subr.mxu0 0.0
    %158 = vmatpush1.msra.mxu0 0.0
    %159 = vmatprep.subr.mxu0 0.0
    %160 = vmatpush1.msra.mxu0 0.0
    %161 = vmatprep.subr.mxu0 0.0
    %162 = vmatpush1.msra.mxu0 0.0
    %163 = vmatprep.subr.mxu0 0.0
    %164 = vmatpush1.msra.mxu0 0.0
    %165 = vmatprep.subr.mxu0 0.0
    %166 = vmatpush1.msra.mxu0 0.0
    %167 = vmatprep.subr.mxu0 0.0
    %168 = vmatpush1.msra.mxu0 0.0
    %169 = vmatprep.subr.mxu0 0.0
    %170 = vmatpush1.msra.mxu0 0.0
    %171 = vmatprep.subr.mxu0 0.0
    %172 = vmatpush1.msra.mxu0 0.0
    %173 = vmatprep.subr.mxu0 0.0
    %174 = vmatpush1.msra.mxu0 0.0
    %175 = vmatprep.subr.mxu0 0.0
    %176 = vmatpush1.msra.mxu0 0.0
    %177 = vmatprep.subr.mxu0 0.0
    %178 = vmatpush1.msra.mxu0 0.0
    %179 = vmatprep.subr.mxu0 0.0
    %180 = vmatpush1.msra.mxu0 0.0
    %181 = vmatprep.subr.mxu0 0.0
    %182 = vmatpush1.msra.mxu0 0.0
    %183 = vmatprep.subr.mxu0 0.0
    %184 = vmatpush1.msra.mxu0 0.0
    %185 = vmatprep.subr.mxu0 0.0
    %186 = vmatpush1.msra.mxu0 0.0
    %187 = vmatprep.subr.mxu0 0.0
    %188 = vmatpush1.msra.mxu0 0.0
    %189 = vmatprep.subr.mxu0 0.0
    %190 = vmatpush1.msra.mxu0 0.0
    %191 = vmatprep.subr.mxu0 0.0
    %192 = vmatpush1.msra.mxu0 0.0
    %193 = vmatprep.subr.mxu0 0.0
    %194 = vmatpush1.msra.mxu0 0.0
    %195 = vmatprep.subr.mxu0 0.0
    %196 = vmatpush1.msra.mxu0 0.0
    %197 = vmatprep.subr.mxu0 0.0
    %198 = vmatpush1.msra.mxu0 0.0
    %199 = vmatprep.subr.mxu0 0.0
    %200 = vmatpush1.msra.mxu0 0.0
    %201 = vmatprep.subr.mxu0 0.0
    %202 = vmatpush1.msra.mxu0 0.0
    %203 = vmatprep.subr.mxu0 0.0
    %204 = vmatpush1.msra.mxu0 0.0
    %205 = vmatprep.subr.mxu0 0.0
    %206 = vmatpush1.msra.mxu0 0.0
    %207 = vmatprep.subr.mxu0 0.0
    %208 = vmatpush1.msra.mxu0 0.0
    %209 = vmatprep.subr.mxu0 0.0
    %210 = vmatpush1.msra.mxu0 0.0
    %211 = vmatprep.subr.mxu0 0.0
    %212 = vmatpush1.msra.mxu0 0.0
    %213 = vmatprep.subr.mxu0 0.0
    %214 = vmatpush1.msra.mxu0 0.0
    %215 = vmatprep.subr.mxu0 0.0
    %216 = vmatpush1.msra.mxu0 0.0
    %217 = vmatprep.mubr.f32.mxu0 0.0
    %218 = vmatmul.mubr.f32.gmra.mrb[0].mxu0 %v106
    %v219 = vpop.f32.mrb[0].mxu0
    %v220 = vadd.f32 0.0, %v219
    %v221 = vpop.f32.mrb[0].mxu0
    %222 = vmatprep.mubr.f32.mxu0 0.0
    %223 = vmatmul.mubr.f32.gmra.mrb[0].mxu0 %v109
    %v224 = vpop.f32.mrb[0].mxu0
    %v225 = vadd.f32 0.0, %v224
    %v226 = vpop.f32.mrb[0].mxu0
    %227 = vmatprep.mubr.f32.mxu0 0.0
    %228 = vmatmul.mubr.f32.gmra.mrb[0].mxu0 %v112
    %v229 = vpop.f32.mrb[0].mxu0
    %v230 = vadd.f32 0.0, %v229
    %v231 = vpop.f32.mrb[0].mxu0
    %232 = vmatprep.mubr.f32.mxu0 0.0
    %233 = vmatmul.mubr.f32.gmra.mrb[0].mxu0 %v115
    %v234 = vpop.f32.mrb[0].mxu0
    %v235 = vadd.f32 0.0, %v234
    %v236 = vpop.f32.mrb[0].mxu0
    %237 = vmatprep.mubr.f32.mxu0 0.0
    %238 = vmatmul.mubr.f32.gmra.mrb[0].mxu0 %v118
    %v239 = vpop.f32.mrb[0].mxu0
    %v240 = vadd.f32 0.0, %v239
    %v241 = vpop.f32.mrb[0].mxu0
    %242 = vmatprep.mubr.f32.mxu0 0.0
    %243 = vmatmul.mubr.f32.gmra.mrb[0].mxu0 %v121
    %v244 = vpop.f32.mrb[0].mxu0
    %v245 = vadd.f32 0.0, %v244
    %v246 = vpop.f32.mrb[0].mxu0
    %247 = vmatprep.mubr.f32.mxu0 0.0
    %248 = vmatmul.mubr.f32.gmra.mrb[0].mxu0 %v124
    %v249 = vpop.f32.mrb[0].mxu0
    %v250 = vadd.f32 0.0, %v249
    %v251 = vpop.f32.mrb[0].mxu0
    %252 = vmatprep.mubr.f32.mxu0 0.0
    %253 = vmatmul.mubr.f32.gmra.mrb[0].mxu0 %v127
    %v254 = vpop.f32.mrb[0].mxu0
    %v255 = vadd.f32 0.0, %v254
    %v256 = vpop.f32.mrb[0].mxu0
    %257 = vmatprep.mubr.f32.mxu0 0.0
    %258 = vmatmul.mubr.f32.gmra.mrb[0].mxu0 %v130
    %v259 = vpop.f32.mrb[0].mxu0
    %v260 = vadd.f32 0.0, %v259
    %v261 = vpop.f32.mrb[0].mxu0
    %262 = vmatprep.mubr.f32.mxu0 0.0
    %263 = vmatmul.mubr.f32.gmra.mrb[0].mxu0 %v133
    %v264 = vpop.f32.mrb[0].mxu0
    %v265 = vadd.f32 0.0, %v264
    %v266 = vpop.f32.mrb[0].mxu0
    %267 = vmatprep.mubr.f32.mxu0 0.0
    %268 = vmatmul.mubr.f32.gmra.mrb[0].mxu0 %v136
    %v269 = vpop.f32.mrb[0].mxu0
    %v270 = vadd.f32 0.0, %v269
    %v271 = vpop.f32.mrb[0].mxu0
    %272 = vmatprep.mubr.f32.mxu0 0.0
    %273 = vmatmul.mubr.f32.gmra.mrb[0].mxu0 %v139
    %v274 = vpop.f32.mrb[0].mxu0
    %v275 = vadd.f32 0.0, %v274
    %v276 = vpop.f32.mrb[0].mxu0
    %277 = vmatprep.mubr.f32.mxu0 0.0
    %278 = vmatmul.mubr.f32.gmra.mrb[0].mxu0 %v142
    %v279 = vpop.f32.mrb[0].mxu0
    %v280 = vadd.f32 0.0, %v279
    %v281 = vpop.f32.mrb[0].mxu0
    %282 = vmatprep.mubr.f32.mxu0 0.0
    %283 = vmatmul.mubr.f32.gmra.mrb[0].mxu0 %v145
    %v284 = vpop.f32.mrb[0].mxu0
    %v285 = vadd.f32 0.0, %v284
    %v286 = vpop.f32.mrb[0].mxu0
    %287 = vmatprep.mubr.f32.mxu0 0.0
    %288 = vmatmul.mubr.f32.gmra.mrb[0].mxu0 %v148
    %v289 = vpop.f32.mrb[0].mxu0
    %v290 = vadd.f32 0.0, %v289
    %v291 = vpop.f32.mrb[0].mxu0
    %292 = vmatprep.mubr.f32.mxu0 0.0
    %293 = vmatmul.mubr.f32.gmra.mrb[0].mxu0 %v151
    %v294 = vpop.f32.mrb[0].mxu0
    %v295 = vadd.f32 0.0, %v294
    %v296 = vpop.f32.mrb[0].mxu0
    %297 = vdwg.mxu0
    %v298 = vmul.f32 %v220, %v220
    %v299 = vmul.f32 %v225, %v225
    %v300 = vmul.f32 %v230, %v230
    %v301 = vmul.f32 %v235, %v235
    %v302 = vmul.f32 %v240, %v240
    %v303 = vmul.f32 %v245, %v245
    %v304 = vmul.f32 %v250, %v250
    %v305 = vmul.f32 %v255, %v255
    %v306 = vmul.f32 %v260, %v260
    %v307 = vmul.f32 %v265, %v265
    %v308 = vmul.f32 %v270, %v270
    %v309 = vmul.f32 %v275, %v275
    %v310 = vmul.f32 %v280, %v280
    %v311 = vmul.f32 %v285, %v285
    %v312 = vmul.f32 %v290, %v290
    %v313 = vmul.f32 %v295, %v295
    %s314 = sld [smem:[#allocation2]]
    %v315 = vstv %s314
    %v316 = vmul.f32 %v298, %v315
    %v317 = vmul.f32 %v299, %v315
    %v318 = vmul.f32 %v300, %v315
    %v319 = vmul.f32 %v301, %v315
    %v320 = vmul.f32 %v302, %v315
    %v321 = vmul.f32 %v303, %v315
    %v322 = vmul.f32 %v304, %v315
    %v323 = vmul.f32 %v305, %v315
    %v324 = vmul.f32 %v306, %v315
    %v325 = vmul.f32 %v307, %v315
    %v326 = vmul.f32 %v308, %v315
    %v327 = vmul.f32 %v309, %v315
    %v328 = vmul.f32 %v310, %v315
    %v329 = vmul.f32 %v311, %v315
    %v330 = vmul.f32 %v312, %v315
    %v331 = vmul.f32 %v313, %v315
    %332 = vst [vmem:[#allocation8] sm:$0xff] %v316
    %333 = vst [vmem:[#allocation8 + $0x8] sm:$0xff] %v317
    %334 = vst [vmem:[#allocation8 + $0x10] sm:$0xff] %v318
    %335 = vst [vmem:[#allocation8 + $0x18] sm:$0xff] %v319
    %336 = vst [vmem:[#allocation8 + $0x20] sm:$0xff] %v320
    %337 = vst [vmem:[#allocation8 + $0x28] sm:$0xff] %v321
    %338 = vst [vmem:[#allocation8 + $0x30] sm:$0xff] %v322
    %339 = vst [vmem:[#allocation8 + $0x38] sm:$0xff] %v323
    %340 = vst [vmem:[#allocation8 + $0x40] sm:$0xff] %v324
    %341 = vst [vmem:[#allocation8 + $0x48] sm:$0xff] %v325
    %342 = vst [vmem:[#allocation8 + $0x50] sm:$0xff] %v326
    %343 = vst [vmem:[#allocation8 + $0x58] sm:$0xff] %v327
    %344 = vst [vmem:[#allocation8 + $0x60] sm:$0xff] %v328
    %345 = vst [vmem:[#allocation8 + $0x68] sm:$0xff] %v329
    %346 = vst [vmem:[#allocation8 + $0x70] sm:$0xff] %v330
    %347 = vst [vmem:[#allocation8 + $0x78] sm:$0xff] %v331
    // Predicated region
    $region30: #{tpu_custom_call.1} parent=1 // pred_check
      _
    $region31: #{tpu_custom_call.1} parent=1 // pred_check_branch
      %349 = sbr.rel (0) target = $region33
    $region32: #{tpu_custom_call.1} parent=1 // pred_region
      %s351 = ssub.s32 2048, 2048
      %352 = vsyncadd [#allocation5], %s351
      %s353 = sshll.u32 [#allocation8], 4
      %s354 = int_to_ptr.vmem [resolvable:$true] %s353
      %359 = dma.vmem_to_hbm [thread:$0]  %s354, 2048, %s5, [#allocation5], 128, 128, 8
    $region33: #{tpu_custom_call.1} parent=1 // pred_fallthru
      _
    // Predicated region
    $region34: #{tpu_custom_call.1} parent=1 // pred_check
      _
    $region35: #{tpu_custom_call.1} parent=1 // pred_check_branch
      %361 = sbr.rel (0) target = $region37
    $region36: #{tpu_custom_call.1} parent=1 // pred_region
      %362 = dma.done [#allocation5], 2048
    $region37: #{tpu_custom_call.1} parent=1 // pred_fallthru
      _
    %363 = vsyncpa [#allocation4], 1
    %364 = vsyncpa [#allocation7], 1
    %365 = vsyncpa [#allocation5], 1

</llo_original>
